<compile_context>
chip_gen: v7x
topology: tpu7x:2x2x1
jax: 0.10.0
libtpu: 0.0.40
codegen_flags: <defaults>
</compile_context>

<pallas_src>
import jax
import jax.numpy as jnp
from jax.experimental import pallas as pl
from jax.experimental.pallas import tpu as pltpu

NEG_SLOPE = 0.01  # PyTorch nn.LeakyReLU default


def _round_up(n, m):
    return ((n + m - 1) // m) * m


def residual_block_kernel(x_ref, w1_ref, b1_ref, w2_ref, b2_ref, o_ref):
    x = x_ref[...]                                   # input dtype (f32)
    x_mxu = x.astype(w1_ref.dtype)                   # bf16 operand for MXU

    # Linear 1 (MXU bf16 x bf16 -> f32 accumulate) + bias (f32)
    h = jnp.dot(x_mxu, w1_ref[...], preferred_element_type=jnp.float32) + b1_ref[...]
    # LeakyReLU (VPU, f32)
    h = jnp.where(h > 0, h, NEG_SLOPE * h)
    # Linear 2 (MXU bf16 x bf16 -> f32 accumulate) + bias (f32)
    y = (jnp.dot(h.astype(w2_ref.dtype), w2_ref[...],
                 preferred_element_type=jnp.float32) + b2_ref[...])

    # Residual add in f32, cast to output dtype on store
    o_ref[...] = (x.astype(jnp.float32) + y).astype(o_ref.dtype)


def prepare_params(w1, b1, w2, b2, *, param_dtype=jnp.bfloat16):
    """Pad (lane-dense) and cast the parameters ONCE, at setup time.

    w1, w2: (D, D) already transposed to (in_features, out_features).
    b1, b2: (1, D).
    """
    D = w1.shape[0]
    D_pad = _round_up(D, 128)
    pad_w = ((0, D_pad - D), (0, D_pad - D))
    pad_b = ((0, 0), (0, D_pad - D))
    params = {
        "w1": jnp.pad(w1, pad_w).astype(param_dtype),
        "w2": jnp.pad(w2, pad_w).astype(param_dtype),
        "b1": jnp.pad(b1, pad_b).astype(jnp.float32),   # biases stay f32
        "b2": jnp.pad(b2, pad_b).astype(jnp.float32),
        "D": D,
        "D_pad": D_pad,
    }
    return params


def _vmem_capacity_bytes():
    """Physical VMEM per TensorCore; conservative 64 MiB fallback (v7x)."""
    try:
        return int(pltpu.get_tpu_info().vmem_capacity_bytes)
    except Exception:
        return 64 << 20


def residual_block(x, params, *, max_tile_b=512):
    """x: (B, D) float32. params: output of prepare_params()."""
    B, D = x.shape
    D_pad = params["D_pad"]
    assert params["D"] == D

    w1_p, w2_p = params["w1"], params["w2"]
    b1_p, b2_p = params["b1"], params["b2"]

    # ---- Batch tiling: pad only to a multiple of 8, tile divides tightly ----
    B_pad8 = _round_up(B, 8)
    n_steps = pl.cdiv(B_pad8, max_tile_b)
    # Give the second v7x TensorCore work when a single big tile would cover
    # the whole batch (each half-tile still >= 128 MXU rows).
    if n_steps == 1 and B_pad8 >= 256:
        n_steps = 2
    tile_b = _round_up(pl.cdiv(B_pad8, n_steps), 8)
    B_pad = n_steps * tile_b          # waste <= 8*n_steps rows, not tile_b

    x_p = jnp.pad(x, ((0, B_pad - B), (0, D_pad - D)))

    grid = (n_steps,)

    # ---- VMEM budget (generation-aware) ----
    w_itemsize = jnp.dtype(w1_p.dtype).itemsize
    x_itemsize = jnp.dtype(x_p.dtype).itemsize
    weight_bytes = 2 * D_pad * D_pad * w_itemsize        # w1+w2, single-buffered
    bias_bytes = 2 * D_pad * 4
    io_bytes = 2 * 2 * tile_b * D_pad * x_itemsize       # x + out, double-buffered
    tmp_bytes = 3 * tile_b * D_pad * 4                   # f32 intermediates
    vmem_needed = weight_bytes + bias_bytes + io_bytes + tmp_bytes + (4 << 20)
    vmem_cap = _vmem_capacity_bytes()
    vmem_limit = int(min(max(vmem_needed, 16 << 20), int(vmem_cap * 0.9)))

    flops = 4 * B_pad * D_pad * D_pad  # two D_pad x D_pad matmuls over B_pad rows
    bytes_accessed = (2 * B_pad * D_pad * x_itemsize      # x read + out write
                      + 2 * D_pad * D_pad * w_itemsize    # weights
                      + 2 * D_pad * 4)                    # biases

    out_p = pl.pallas_call(
        residual_block_kernel,
        out_shape=jax.ShapeDtypeStruct((B_pad, D_pad), x.dtype),
        grid_spec=pltpu.PrefetchScalarGridSpec(
            num_scalar_prefetch=0,
            grid=grid,
            in_specs=[
                pl.BlockSpec((tile_b, D_pad), lambda i: (i, 0)),        # x tile
                pl.BlockSpec((D_pad, D_pad), lambda i: (0, 0),
                             pipeline_mode=pl.Buffered(1)),             # w1 resident
                pl.BlockSpec((1, D_pad), lambda i: (0, 0),
                             pipeline_mode=pl.Buffered(1)),             # b1
                pl.BlockSpec((D_pad, D_pad), lambda i: (0, 0),
                             pipeline_mode=pl.Buffered(1)),             # w2 resident
                pl.BlockSpec((1, D_pad), lambda i: (0, 0),
                             pipeline_mode=pl.Buffered(1)),             # b2
            ],
            out_specs=pl.BlockSpec((tile_b, D_pad), lambda i: (i, 0)),
        ),
        compiler_params=pltpu.CompilerParams(
            dimension_semantics=("parallel",),
            vmem_limit_bytes=vmem_limit,
        ),
        cost_estimate=pl.CostEstimate(
            flops=flops, transcendentals=0, bytes_accessed=bytes_accessed),
    )(x_p, w1_p, b1_p, w2_p, b2_p)

    return out_p[:B, :D]


def reference(x, w1, b1, w2, b2):
    h = x @ w1 + b1
    h = jnp.where(h > 0, h, NEG_SLOPE * h)
    y = h @ w2 + b2
    return x + y


if __name__ == "__main__":
    key = jax.random.PRNGKey(0)
    B, D = 16, 32  # batch, input_dim (ResidualBlock(input_dim=32))

    kx, kw1, kb1, kw2, kb2 = jax.random.split(key, 5)

    # Deterministic parameter init (uniform ~ PyTorch Linear default bound 1/sqrt(D))
    bound = 1.0 / jnp.sqrt(jnp.float32(D))
    x = jax.random.normal(kx, (B, D), dtype=jnp.float32)
    w1 = jax.random.uniform(kw1, (D, D), minval=-bound, maxval=bound, dtype=jnp.float32)
    b1 = jax.random.uniform(kb1, (1, D), minval=-bound, maxval=bound, dtype=jnp.float32)
    w2 = jax.random.uniform(kw2, (D, D), minval=-bound, maxval=bound, dtype=jnp.float32)
    b2 = jax.random.uniform(kb2, (1, D), minval=-bound, maxval=bound, dtype=jnp.float32)

    params = prepare_params(w1, b1, w2, b2)          # pad + bf16 cast, once
    out = residual_block(x, params)
    out = jax.block_until_ready(out)

    ref = reference(x, w1, b1, w2, b2)
    assert out.shape == (B, D)
    # bf16 MXU operands (f32 accumulate) -> looser tolerance vs. full-f32 reference.
    assert jnp.allclose(out, ref, atol=2e-2, rtol=2e-2), "mismatch vs reference"

    print("KERNEL_OK")
</pallas_src>

<mosaic_0001>
module attributes {stable_mosaic.version = 11 : i64} {
  func.func @residual_block_kernel(%arg0: i32, %arg1: memref<16x128xf32, #tpu.memory_space<vmem>>, %arg2: memref<128x128xbf16, #tpu.memory_space<vmem>>, %arg3: memref<1x128xf32, #tpu.memory_space<vmem>>, %arg4: memref<128x128xbf16, #tpu.memory_space<vmem>>, %arg5: memref<1x128xf32, #tpu.memory_space<vmem>>, %arg6: memref<16x128xf32, #tpu.memory_space<vmem>>) attributes {dimension_semantics = [#tpu.dimension_semantics<parallel>], iteration_bounds = array<i64: 1>, scalar_prefetch = 0 : i64, scratch_operands = 0 : i64, tpu.core_type = #tpu.core_type<tc>, window_params = [{transform_indices = @transform_0, window_bounds = array<i64: 16, 128>}, {pipeline_mode = #tpu.pipeline_mode<synchronous>, transform_indices = @transform_1, window_bounds = array<i64: 128, 128>}, {pipeline_mode = #tpu.pipeline_mode<synchronous>, transform_indices = @transform_2, window_bounds = array<i64: 1, 128>}, {pipeline_mode = #tpu.pipeline_mode<synchronous>, transform_indices = @transform_3, window_bounds = array<i64: 128, 128>}, {pipeline_mode = #tpu.pipeline_mode<synchronous>, transform_indices = @transform_4, window_bounds = array<i64: 1, 128>}, {transform_indices = @transform_5, window_bounds = array<i64: 16, 128>}]} {
    %c0 = arith.constant 0 : index
    %c0_0 = arith.constant 0 : index
    %0 = vector.load %arg1[%c0, %c0_0] : memref<16x128xf32, #tpu.memory_space<vmem>>, vector<16x128xf32>
    %1 = arith.truncf %0 : vector<16x128xf32> to vector<16x128xbf16>
    %c0_1 = arith.constant 0 : index
    %c0_2 = arith.constant 0 : index
    %2 = vector.load %arg2[%c0_1, %c0_2] : memref<128x128xbf16, #tpu.memory_space<vmem>>, vector<128x128xbf16>
    %cst = arith.constant dense<0.000000e+00> : vector<16x128xf32>
    %3 = tpu.matmul %1, %2, %cst {dimension_numbers = #tpu.dot_dimension_numbers<[1], [0], [0], [1], [0, 0, 1, 1], [], []>} : vector<16x128xbf16>, vector<128x128xbf16>, vector<16x128xf32> -> vector<16x128xf32>
    %c0_3 = arith.constant 0 : index
    %c0_4 = arith.constant 0 : index
    %4 = vector.load %arg3[%c0_3, %c0_4] : memref<1x128xf32, #tpu.memory_space<vmem>>, vector<1x128xf32>
    %5 = vector.broadcast %4 : vector<1x128xf32> to vector<16x128xf32>
    %6 = arith.addf %3, %5 : vector<16x128xf32>
    %cst_5 = arith.constant 0.000000e+00 : f32
    %7 = vector.broadcast %cst_5 : f32 to vector<16x128xf32>
    %8 = arith.cmpf ogt, %6, %7 : vector<16x128xf32>
    %cst_6 = arith.constant 0.00999999977 : f32
    %9 = vector.broadcast %cst_6 : f32 to vector<16x128xf32>
    %10 = arith.mulf %9, %6 : vector<16x128xf32>
    %11 = arith.select %8, %6, %10 : vector<16x128xi1>, vector<16x128xf32>
    %12 = arith.truncf %11 : vector<16x128xf32> to vector<16x128xbf16>
    %c0_7 = arith.constant 0 : index
    %c0_8 = arith.constant 0 : index
    %13 = vector.load %arg4[%c0_7, %c0_8] : memref<128x128xbf16, #tpu.memory_space<vmem>>, vector<128x128xbf16>
    %cst_9 = arith.constant dense<0.000000e+00> : vector<16x128xf32>
    %14 = tpu.matmul %12, %13, %cst_9 {dimension_numbers = #tpu.dot_dimension_numbers<[1], [0], [0], [1], [0, 0, 1, 1], [], []>} : vector<16x128xbf16>, vector<128x128xbf16>, vector<16x128xf32> -> vector<16x128xf32>
    %c0_10 = arith.constant 0 : index
    %c0_11 = arith.constant 0 : index
    %15 = vector.load %arg5[%c0_10, %c0_11] : memref<1x128xf32, #tpu.memory_space<vmem>>, vector<1x128xf32>
    %16 = vector.broadcast %15 : vector<1x128xf32> to vector<16x128xf32>
    %17 = arith.addf %14, %16 : vector<16x128xf32>
    %18 = arith.addf %0, %17 : vector<16x128xf32>
    %c0_12 = arith.constant 0 : index
    %c0_13 = arith.constant 0 : index
    %19 = vector.load %arg6[%c0_12, %c0_13] : memref<16x128xf32, #tpu.memory_space<vmem>>, vector<16x128xf32>
    tpu.vector_store %arg6[%c0_12, %c0_13], %18 {strides = array<i32>} : memref<16x128xf32, #tpu.memory_space<vmem>>, vector<16x128xf32>,
    return
  }
  func.func @transform_0(%arg0: i32) -> (i32, i32) {
    %c0_i32 = arith.constant 0 : i32
    %c0_i32_0 = arith.constant 0 : i32
    return %arg0, %c0_i32 : i32, i32
  }
  func.func @transform_1(%arg0: i32) -> (i32, i32) {
    %c0_i32 = arith.constant 0 : i32
    %c0_i32_0 = arith.constant 0 : i32
    %c0_i32_1 = arith.constant 0 : i32
    return %c0_i32, %c0_i32_0 : i32, i32
  }
  func.func @transform_2(%arg0: i32) -> (i32, i32) {
    %c0_i32 = arith.constant 0 : i32
    %c0_i32_0 = arith.constant 0 : i32
    %c0_i32_1 = arith.constant 0 : i32
    return %c0_i32, %c0_i32_0 : i32, i32
  }
  func.func @transform_3(%arg0: i32) -> (i32, i32) {
    %c0_i32 = arith.constant 0 : i32
    %c0_i32_0 = arith.constant 0 : i32
    %c0_i32_1 = arith.constant 0 : i32
    return %c0_i32, %c0_i32_0 : i32, i32
  }
  func.func @transform_4(%arg0: i32) -> (i32, i32) {
    %c0_i32 = arith.constant 0 : i32
    %c0_i32_0 = arith.constant 0 : i32
    %c0_i32_1 = arith.constant 0 : i32
    return %c0_i32, %c0_i32_0 : i32, i32
  }
  func.func @transform_5(%arg0: i32) -> (i32, i32) {
    %c0_i32 = arith.constant 0 : i32
    %c0_i32_0 = arith.constant 0 : i32
    return %arg0, %c0_i32 : i32, i32
  }
}

</mosaic_0001>

<llo_original>
// kernel: tpu_custom_call.1
$region0: #{tpu_custom_call.1}
  #allocation0 [shape = 'u32[]', space=smem, size = 0x4, offset = 0x4, fixed_abs, tag = 'smem constant byte address 0x4 - core index']
  #allocation1 [shape = 'u32[144,128]{1,0:T(1,128)}', space=vmem, size = 0x12000, scoped, tag = 'internal scratch']
  %s0 = inlined_call_operand.hbm [shape: f32[16,128], index: 0, kind: input, shape index: {}]
  %s1 = inlined_call_operand.hbm [shape: bf16[128,128], index: 1, kind: input, shape index: {}]
  %s2 = inlined_call_operand.vmem [shape: f32[1,128], index: 2, kind: input, shape index: {}]
  %s3 = inlined_call_operand.hbm [shape: bf16[128,128], index: 3, kind: input, shape index: {}]
  %s4 = inlined_call_operand.vmem [shape: f32[1,128], index: 4, kind: input, shape index: {}]
  %s5 = inlined_call_operand.hbm [shape: f32[16,128], index: 5, kind: output, shape index: {}]
  %s6 = sld [smem:[#allocation0]]
  $region42: #{tpu_custom_call.1} parent=0
    _
  %s8 = ssub.s32 1, %s6
  %s9 = scalar_select 0, %s8, %s6
  $region1: #{tpu_custom_call.1} parent=0
    #allocation2 [shape = 'u8[8192]{0}', space=vmem, size = 0x2000, scoped, tag = 'input window, operand 0, single buffered']
    #allocation3 [shape = 's32[1]{0}', space=sflag, size = 0x4, scoped, tag = 'scoped memory for tpu_custom_call.1']
    #allocation4 [shape = 's32[1]{0}', space=sflag, size = 0x4, scoped, tag = 'scoped memory for tpu_custom_call.1']
    #allocation5 [shape = 'u8[32768]{0}', space=vmem, size = 0x8000, scoped, tag = 'input window, operand 1, single buffered']
    #allocation6 [shape = 's32[1]{0}', space=sflag, size = 0x4, scoped, tag = 'scoped memory for tpu_custom_call.1']
    #allocation7 [shape = 'u8[32768]{0}', space=vmem, size = 0x8000, scoped, tag = 'input window, operand 3, single buffered']
    #allocation8 [shape = 'u8[8192]{0}', space=vmem, size = 0x2000, scoped, tag = 'output window, operand 0, single buffered']
    %10 = vsyncpa [#allocation3], 0
    %11 = vsyncpa [#allocation6], 0
    %12 = vsyncpa [#allocation4], 0
    // Predicated region
    $region2: #{tpu_custom_call.1} parent=1 // pred_check
      _
    $region3: #{tpu_custom_call.1} parent=1 // pred_check_branch
      %14 = sbr.rel (0) target = $region5
    $region4: #{tpu_custom_call.1} parent=1 // pred_region
      %s16 = ssub.s32 256, 256
      %17 = vsyncadd [#allocation3], %s16
      %s18 = sshll.u32 [#allocation2], 4
      %s19 = int_to_ptr.vmem [resolvable:$true] %s18
      %24 = dma.hbm_to_vmem [thread:$0]  %s0, 256, %s19, [#allocation3], 128, 128, 8
    $region5: #{tpu_custom_call.1} parent=1 // pred_fallthru
      _
    // Predicated region
    $region6: #{tpu_custom_call.1} parent=1 // pred_check
      _
    $region7: #{tpu_custom_call.1} parent=1 // pred_check_branch
      %26 = sbr.rel (0) target = $region9
    $region8: #{tpu_custom_call.1} parent=1 // pred_region
      %s28 = ssub.s32 1024, 1024
      %29 = vsyncadd [#allocation6], %s28
      %s30 = sshll.u32 [#allocation5], 4
      %s31 = int_to_ptr.vmem [resolvable:$true] %s30
      %36 = dma.hbm_to_vmem [thread:$0]  %s1, 1024, %s31, [#allocation6], 64, 64, 4
    $region9: #{tpu_custom_call.1} parent=1 // pred_fallthru
      _
    // Predicated region
    $region10: #{tpu_custom_call.1} parent=1 // pred_check
      _
    $region11: #{tpu_custom_call.1} parent=1 // pred_check_branch
      %38 = sbr.rel (0) target = $region13
    $region12: #{tpu_custom_call.1} parent=1 // pred_region
      _
    $region13: #{tpu_custom_call.1} parent=1 // pred_fallthru
      _
    // Predicated region
    $region14: #{tpu_custom_call.1} parent=1 // pred_check
      _
    $region15: #{tpu_custom_call.1} parent=1 // pred_check_branch
      %40 = sbr.rel (0) target = $region17
    $region16: #{tpu_custom_call.1} parent=1 // pred_region
      %s42 = ssub.s32 1024, 1024
      %43 = vsyncadd [#allocation6], %s42
      %s44 = sshll.u32 [#allocation7], 4
      %s45 = int_to_ptr.vmem [resolvable:$true] %s44
      %50 = dma.hbm_to_vmem [thread:$0]  %s3, 1024, %s45, [#allocation6], 64, 64, 4
    $region17: #{tpu_custom_call.1} parent=1 // pred_fallthru
      _
    // Predicated region
    $region18: #{tpu_custom_call.1} parent=1 // pred_check
      _
    $region19: #{tpu_custom_call.1} parent=1 // pred_check_branch
      %52 = sbr.rel (0) target = $region21
    $region20: #{tpu_custom_call.1} parent=1 // pred_region
      _
    $region21: #{tpu_custom_call.1} parent=1 // pred_fallthru
      _
    // Predicated region
    $region22: #{tpu_custom_call.1} parent=1 // pred_check
      _
    $region23: #{tpu_custom_call.1} parent=1 // pred_check_branch
      %54 = sbr.rel (0) target = $region25
    $region24: #{tpu_custom_call.1} parent=1 // pred_region
      %55 = dma.done [#allocation3], 256
    $region25: #{tpu_custom_call.1} parent=1 // pred_fallthru
      _
    // Predicated region
    $region26: #{tpu_custom_call.1} parent=1 // pred_check
      _
    $region27: #{tpu_custom_call.1} parent=1 // pred_check_branch
      %57 = sbr.rel (0) target = $region29
    $region28: #{tpu_custom_call.1} parent=1 // pred_region
      %58 = dma.done [#allocation6], 1024
    $region29: #{tpu_custom_call.1} parent=1 // pred_fallthru
      _
    // Predicated region
    $region30: #{tpu_custom_call.1} parent=1 // pred_check
      _
    $region31: #{tpu_custom_call.1} parent=1 // pred_check_branch
      %60 = sbr.rel (0) target = $region33
    $region32: #{tpu_custom_call.1} parent=1 // pred_region
      %61 = dma.done [#allocation6], 1024
    $region33: #{tpu_custom_call.1} parent=1 // pred_fallthru
      _
    %v63 = vld [vmem:[#allocation2] sm:$0xff]
    %v64 = vld [vmem:[#allocation2 + $0x8] sm:$0xff]
    %v65 = vpack.c.bf16 %v64, %v63
    %v66 = vld [vmem:[#allocation5] sm:$0xf]
    %v67 = vld [vmem:[#allocation5 + $0x4] sm:$0xf]
    %v68 = vld [vmem:[#allocation5 + $0x8] sm:$0xf]
    %v69 = vld [vmem:[#allocation5 + $0xc] sm:$0xf]
    %v70 = vld [vmem:[#allocation5 + $0x10] sm:$0xf]
    %v71 = vld [vmem:[#allocation5 + $0x14] sm:$0xf]
    %v72 = vld [vmem:[#allocation5 + $0x18] sm:$0xf]
    %v73 = vld [vmem:[#allocation5 + $0x1c] sm:$0xf]
    %v74 = vld [vmem:[#allocation5 + $0x20] sm:$0xf]
    %v75 = vld [vmem:[#allocation5 + $0x24] sm:$0xf]
    %v76 = vld [vmem:[#allocation5 + $0x28] sm:$0xf]
    %v77 = vld [vmem:[#allocation5 + $0x2c] sm:$0xf]
    %v78 = vld [vmem:[#allocation5 + $0x30] sm:$0xf]
    %v79 = vld [vmem:[#allocation5 + $0x34] sm:$0xf]
    %v80 = vld [vmem:[#allocation5 + $0x38] sm:$0xf]
    %v81 = vld [vmem:[#allocation5 + $0x3c] sm:$0xf]
    %v82 = vld [vmem:[%s2] sm:$0x1]
    %v84 = vlaneseq
    %v85 = vshrl.u32 %v84, 7
    %v86 = vsub.s32 0, %v85
    %v87 = vrot.slane %v82, %v86
    %v105 = vunpack.c.l.b16 %v66
    %v106 = vunpack.c.l.b16 %v67
    %v107 = vunpack.c.l.b16 %v68
    %v108 = vunpack.c.l.b16 %v69
    %v109 = vunpack.c.l.b16 %v70
    %v110 = vunpack.c.l.b16 %v71
    %v111 = vunpack.c.l.b16 %v72
    %v112 = vunpack.c.l.b16 %v73
    %v113 = vunpack.c.l.b16 %v74
    %v114 = vunpack.c.l.b16 %v75
    %v115 = vunpack.c.l.b16 %v76
    %v116 = vunpack.c.l.b16 %v77
    %v117 = vunpack.c.l.b16 %v78
    %v118 = vunpack.c.l.b16 %v79
    %v119 = vunpack.c.l.b16 %v80
    %v120 = vunpack.c.l.b16 %v81
    %v121 = vpack.c.b16 %v106, %v105
    %v122 = vpack.c.b16 %v108, %v107
    %v123 = vpack.c.b16 %v110, %v109
    %v124 = vpack.c.b16 %v112, %v111
    %v125 = vpack.c.b16 %v114, %v113
    %v126 = vpack.c.b16 %v116, %v115
    %v127 = vpack.c.b16 %v118, %v117
    %v128 = vpack.c.b16 %v120, %v119
    %137 = vmatprep.subr.bf16.mxu0 0
    %138 = vmatpush1.bf16.msra.mxu0 %v121
    %139 = vmatprep.subr.bf16.mxu0 0
    %140 = vmatpush1.bf16.msra.mxu0 %v122
    %141 = vmatprep.subr.bf16.mxu0 0
    %142 = vmatpush1.bf16.msra.mxu0 %v123
    %143 = vmatprep.subr.bf16.mxu0 0
    %144 = vmatpush1.bf16.msra.mxu0 %v124
    %145 = vmatprep.subr.bf16.mxu0 0
    %146 = vmatpush1.bf16.msra.mxu0 %v125
    %147 = vmatprep.subr.bf16.mxu0 0
    %148 = vmatpush1.bf16.msra.mxu0 %v126
    %149 = vmatprep.subr.bf16.mxu0 0
    %150 = vmatpush1.bf16.msra.mxu0 %v127
    %151 = vmatprep.subr.bf16.mxu0 0
    %152 = vmatpush1.bf16.msra.mxu0 %v128
    %153 = vmatprep.subr.bf16.mxu0 0
    %154 = vmatpush1.bf16.msra.mxu0 0
    %155 = vmatprep.subr.bf16.mxu0 0
    %156 = vmatpush1.bf16.msra.mxu0 0
    %157 = vmatprep.subr.bf16.mxu0 0
    %158 = vmatpush1.bf16.msra.mxu0 0
    %159 = vmatprep.subr.bf16.mxu0 0
    %160 = vmatpush1.bf16.msra.mxu0 0
    %161 = vmatprep.subr.bf16.mxu0 0
    %162 = vmatpush1.bf16.msra.mxu0 0
    %163 = vmatprep.subr.bf16.mxu0 0
    %164 = vmatpush1.bf16.msra.mxu0 0
    %165 = vmatprep.subr.bf16.mxu0 0
    %166 = vmatpush1.bf16.msra.mxu0 0
    %167 = vmatprep.subr.bf16.mxu0 0
    %168 = vmatpush1.bf16.msra.mxu0 0
    %169 = vmatprep.mubr.bf16.mxu0 0
    %170 = vmatmul.mubr.bf16.gmra.mrb[0].mxu0 %v65
    %v171 = vpop.f32.mrb[0].mxu0
    %v172 = vadd.f32 %v87, %v171
    %v173 = vpop.f32.mrb[0].mxu0
    %v174 = vpop.f32.mrb[0].mxu0
    %v175 = vadd.f32 %v87, %v174
    %v176 = vpop.f32.mrb[0].mxu0
    %177 = vdwg.mxu0
    %vm178 = vcmp.gt.f32.partialorder %v172, 0.0
    %vm179 = vcmp.gt.f32.partialorder %v175, 0.0
    %v180 = vmul.f32 %v172, 0.01
    %v181 = vmul.f32 %v175, 0.01
    %v182 = vsel %vm178, %v172, %v180
    %v183 = vsel %vm179, %v175, %v181
    %v184 = vpack.c.bf16 %v183, %v182
    %v185 = vld [vmem:[#allocation7] sm:$0xf]
    %v186 = vld [vmem:[#allocation7 + $0x4] sm:$0xf]
    %v187 = vld [vmem:[#allocation7 + $0x8] sm:$0xf]
    %v188 = vld [vmem:[#allocation7 + $0xc] sm:$0xf]
    %v189 = vld [vmem:[#allocation7 + $0x10] sm:$0xf]
    %v190 = vld [vmem:[#allocation7 + $0x14] sm:$0xf]
    %v191 = vld [vmem:[#allocation7 + $0x18] sm:$0xf]
    %v192 = vld [vmem:[#allocation7 + $0x1c] sm:$0xf]
    %v193 = vld [vmem:[#allocation7 + $0x20] sm:$0xf]
    %v194 = vld [vmem:[#allocation7 + $0x24] sm:$0xf]
    %v195 = vld [vmem:[#allocation7 + $0x28] sm:$0xf]
    %v196 = vld [vmem:[#allocation7 + $0x2c] sm:$0xf]
    %v197 = vld [vmem:[#allocation7 + $0x30] sm:$0xf]
    %v198 = vld [vmem:[#allocation7 + $0x34] sm:$0xf]
    %v199 = vld [vmem:[#allocation7 + $0x38] sm:$0xf]
    %v200 = vld [vmem:[#allocation7 + $0x3c] sm:$0xf]
    %v201 = vld [vmem:[%s4] sm:$0x1]
    %v203 = vlaneseq
    %v204 = vshrl.u32 %v203, 7
    %v205 = vsub.s32 0, %v204
    %v206 = vrot.slane %v201, %v205
    %v224 = vunpack.c.l.b16 %v185
    %v225 = vunpack.c.l.b16 %v186
    %v226 = vunpack.c.l.b16 %v187
    %v227 = vunpack.c.l.b16 %v188
    %v228 = vunpack.c.l.b16 %v189
    %v229 = vunpack.c.l.b16 %v190
    %v230 = vunpack.c.l.b16 %v191
    %v231 = vunpack.c.l.b16 %v192
    %v232 = vunpack.c.l.b16 %v193
    %v233 = vunpack.c.l.b16 %v194
    %v234 = vunpack.c.l.b16 %v195
    %v235 = vunpack.c.l.b16 %v196
    %v236 = vunpack.c.l.b16 %v197
    %v237 = vunpack.c.l.b16 %v198
    %v238 = vunpack.c.l.b16 %v199
    %v239 = vunpack.c.l.b16 %v200
    %v240 = vpack.c.b16 %v225, %v224
    %v241 = vpack.c.b16 %v227, %v226
    %v242 = vpack.c.b16 %v229, %v228
    %v243 = vpack.c.b16 %v231, %v230
    %v244 = vpack.c.b16 %v233, %v232
    %v245 = vpack.c.b16 %v235, %v234
    %v246 = vpack.c.b16 %v237, %v236
    %v247 = vpack.c.b16 %v239, %v238
    %256 = vmatprep.subr.bf16.mxu0 0
    %257 = vmatpush1.bf16.msra.mxu0 %v240
    %258 = vmatprep.subr.bf16.mxu0 0
    %259 = vmatpush1.bf16.msra.mxu0 %v241
    %260 = vmatprep.subr.bf16.mxu0 0
    %261 = vmatpush1.bf16.msra.mxu0 %v242
    %262 = vmatprep.subr.bf16.mxu0 0
    %263 = vmatpush1.bf16.msra.mxu0 %v243
    %264 = vmatprep.subr.bf16.mxu0 0
    %265 = vmatpush1.bf16.msra.mxu0 %v244
    %266 = vmatprep.subr.bf16.mxu0 0
    %267 = vmatpush1.bf16.msra.mxu0 %v245
    %268 = vmatprep.subr.bf16.mxu0 0
    %269 = vmatpush1.bf16.msra.mxu0 %v246
    %270 = vmatprep.subr.bf16.mxu0 0
    %271 = vmatpush1.bf16.msra.mxu0 %v247
    %272 = vmatprep.subr.bf16.mxu0 0
    %273 = vmatpush1.bf16.msra.mxu0 0
    %274 = vmatprep.subr.bf16.mxu0 0
    %275 = vmatpush1.bf16.msra.mxu0 0
    %276 = vmatprep.subr.bf16.mxu0 0
    %277 = vmatpush1.bf16.msra.mxu0 0
    %278 = vmatprep.subr.bf16.mxu0 0
    %279 = vmatpush1.bf16.msra.mxu0 0
    %280 = vmatprep.subr.bf16.mxu0 0
    %281 = vmatpush1.bf16.msra.mxu0 0
    %282 = vmatprep.subr.bf16.mxu0 0
    %283 = vmatpush1.bf16.msra.mxu0 0
    %284 = vmatprep.subr.bf16.mxu0 0
    %285 = vmatpush1.bf16.msra.mxu0 0
    %286 = vmatprep.subr.bf16.mxu0 0
    %287 = vmatpush1.bf16.msra.mxu0 0
    %288 = vmatprep.mubr.bf16.mxu0 0
    %289 = vmatmul.mubr.bf16.gmra.mrb[0].mxu0 %v184
    %v290 = vpop.f32.mrb[0].mxu0
    %v291 = vadd.f32 %v206, %v290
    %v292 = vpop.f32.mrb[0].mxu0
    %v293 = vpop.f32.mrb[0].mxu0
    %v294 = vadd.f32 %v206, %v293
    %v295 = vpop.f32.mrb[0].mxu0
    %296 = vdwg.mxu0
    %v297 = vadd.f32 %v63, %v291
    %v298 = vadd.f32 %v64, %v294
    %299 = vst [vmem:[#allocation8] sm:$0xff] %v297
    %300 = vst [vmem:[#allocation8 + $0x8] sm:$0xff] %v298
    // Predicated region
    $region34: #{tpu_custom_call.1} parent=1 // pred_check
      _
    $region35: #{tpu_custom_call.1} parent=1 // pred_check_branch
      %302 = sbr.rel (0) target = $region37
    $region36: #{tpu_custom_call.1} parent=1 // pred_region
      %s304 = ssub.s32 256, 256
      %305 = vsyncadd [#allocation4], %s304
      %s306 = sshll.u32 [#allocation8], 4
      %s307 = int_to_ptr.vmem [resolvable:$true] %s306
      %312 = dma.vmem_to_hbm [thread:$0]  %s307, 256, %s5, [#allocation4], 128, 128, 8
    $region37: #{tpu_custom_call.1} parent=1 // pred_fallthru
      _
    // Predicated region
    $region38: #{tpu_custom_call.1} parent=1 // pred_check
      _
    $region39: #{tpu_custom_call.1} parent=1 // pred_check_branch
      %314 = sbr.rel (0) target = $region41
    $region40: #{tpu_custom_call.1} parent=1 // pred_region
      %315 = dma.done [#allocation4], 256
    $region41: #{tpu_custom_call.1} parent=1 // pred_fallthru
      _
    %316 = vsyncpa [#allocation3], 1
    %317 = vsyncpa [#allocation6], 1
    %318 = vsyncpa [#allocation4], 1

</llo_original>
